<compile_context>
chip_gen: v7x
topology: tpu7x:2x2x1
jax: 0.10.0
libtpu: 0.0.40
codegen_flags: <defaults>
</compile_context>

<pallas_src>
import functools
import math

import jax
import jax.numpy as jnp
from jax import lax
from jax.experimental import pallas as pl
from jax.experimental.pallas import tpu as pltpu

LANE = 128
SUB = 8
MAX_BLOCK_ROWS = 2048  # (2048, 128) f32 = 1 MiB per input block


def _awl_kernel(pred_ref, target_ref, out_ref, *, omega, theta, epsilon, alpha,
                valid_rows, need_mask):
    block_rows = pred_ref.shape[0]

    y = target_ref[...].astype(jnp.float32)
    y_hat = pred_ref[...].astype(jnp.float32)
    delta = jnp.abs(y - y_hat)
    a_minus_y = alpha - y

    # Branch 1 (delta < theta): omega * log(1 + (delta/omega)^(alpha - y)).
    # jnp.power handles delta == 0 (0^positive == 0) so no extra guard needed;
    # do NOT rewrite this as exp(a*log(delta/omega)) (log(0) = -inf).
    loss1 = omega * jnp.log1p(jnp.power(delta * (1.0 / omega), a_minus_y))

    # Branch 2 (delta >= theta), constant-folded to minimize EUP work:
    #   t = theta/epsilon is a compile-time constant,
    #   pow_t = t^(alpha - y) = exp((alpha - y) * ln t)          (1 exp)
    #   t^(alpha - y - 1) = pow_t / t
    #   A = omega * (alpha - y) * pow_t / (theta * (1 + pow_t))
    ln_t = math.log(theta / epsilon)
    pow_t = jnp.exp(a_minus_y * ln_t)
    inv_1p = pl.reciprocal(1.0 + pow_t, approx=True)  # EUP vrcp, ~2^-12 rel err
    A = (omega / theta) * a_minus_y * pow_t * inv_1p
    C = theta * A - omega * jnp.log1p(pow_t)
    loss2 = A * delta - C

    loss = jnp.where(delta < theta, loss1, loss2)

    if need_mask:
        # Last grid block may extend past the real array; zero those rows
        # (their VMEM contents are unspecified).
        row = lax.broadcasted_iota(jnp.int32, loss.shape, 0)
        global_row = pl.program_id(0) * block_rows + row
        loss = jnp.where(global_row < valid_rows, loss, 0.0)

    # Reduce (block_rows, 128) -> (8, 128) with pure VPU adds (no cross-lane /
    # cross-sublane XLU work); final scalar reduction happens in the wrapper.
    out_ref[...] = loss.reshape(block_rows // SUB, SUB, LANE).sum(axis=0)


def adaptive_wing_loss(pred, target, *, omega=14.0, theta=0.5, epsilon=1.0,
                       alpha=2.1):
    """Pallas TPU implementation of AdaptiveWingLoss.forward."""
    assert pred.shape == target.shape
    total = pred.size  # == len(loss1) + len(loss2) in the PyTorch reference

    # DMA inputs in their native dtype; the f32 cast happens inside the kernel.
    flat_p = pred.reshape(-1)
    flat_t = target.reshape(-1)

    align = SUB * LANE
    rem = total % align
    if rem:
        # Rare unaligned case: tiny zero-pad (zeros contribute exactly 0 to the
        # loss sum; the mean below divides by the true element count).
        pad = align - rem
        flat_p = jnp.pad(flat_p, (0, pad))
        flat_t = jnp.pad(flat_t, (0, pad))

    rows = flat_p.size // LANE            # multiple of 8 by construction
    p2 = flat_p.reshape(rows, LANE)
    t2 = flat_t.reshape(rows, LANE)

    block_rows = min(MAX_BLOCK_ROWS, rows)
    grid = pl.cdiv(rows, block_rows)
    need_mask = (rows % block_rows) != 0  # trace-time flag

    kernel = functools.partial(
        _awl_kernel,
        omega=float(omega), theta=float(theta),
        epsilon=float(epsilon), alpha=float(alpha),
        valid_rows=rows, need_mask=need_mask)

    partials = pl.pallas_call(
        kernel,
        out_shape=jax.ShapeDtypeStruct((grid * SUB, LANE), jnp.float32),
        grid_spec=pltpu.PrefetchScalarGridSpec(
            num_scalar_prefetch=0,
            grid=(grid,),
            in_specs=[
                pl.BlockSpec((block_rows, LANE), lambda i: (i, 0)),
                pl.BlockSpec((block_rows, LANE), lambda i: (i, 0)),
            ],
            out_specs=pl.BlockSpec((SUB, LANE), lambda i: (i, 0)),
        ),
        compiler_params=pltpu.CompilerParams(
            dimension_semantics=("parallel",)),
    )(p2, t2)

    # Tiny final reduction + mean over the true (unpadded) element count.
    return jnp.sum(partials, dtype=jnp.float32) / jnp.float32(total)


def _reference(pred, target, omega=14.0, theta=0.5, epsilon=1.0, alpha=2.1):
    """Pure-JAX reference mirroring the PyTorch module (exact math)."""
    y = target.astype(jnp.float32)
    y_hat = pred.astype(jnp.float32)
    delta = jnp.abs(y - y_hat)
    a_minus_y = alpha - y
    loss1 = omega * jnp.log1p(jnp.power(delta / omega, a_minus_y))
    t = theta / epsilon
    pow_t = jnp.power(t, a_minus_y)
    A = (omega * (1.0 / (1.0 + pow_t)) * a_minus_y
         * jnp.power(t, a_minus_y - 1.0) * (1.0 / epsilon))
    C = theta * A - omega * jnp.log1p(pow_t)
    loss2 = A * delta - C
    loss = jnp.where(delta < theta, loss1, loss2)
    return jnp.sum(loss) / loss.size


if __name__ == "__main__":
    key = jax.random.PRNGKey(0)

    # Primary small test: (B, N, H, W) = (2, 4, 16, 16).
    k1, k2 = jax.random.split(key)
    pred = jax.random.uniform(k1, (2, 4, 16, 16), dtype=jnp.float32)
    target = jax.random.uniform(k2, (2, 4, 16, 16), dtype=jnp.float32)

    out = jax.block_until_ready(adaptive_wing_loss(pred, target))
    ref = _reference(pred, target)
    assert jnp.allclose(out, ref, rtol=1e-3, atol=1e-3), (out, ref)

    # Secondary test exercising the multi-block grid + masked partial last
    # block (rows = 2176 > block_rows = 2048, not a multiple).
    k3, k4 = jax.random.split(k1)
    pred2 = jax.random.uniform(k3, (4, 17, 64, 64), dtype=jnp.float32)
    target2 = jax.random.uniform(k4, (4, 17, 64, 64), dtype=jnp.float32)

    out2 = jax.block_until_ready(adaptive_wing_loss(pred2, target2))
    ref2 = _reference(pred2, target2)
    assert jnp.allclose(out2, ref2, rtol=1e-3, atol=1e-3), (out2, ref2)

    print("KERNEL_OK")
</pallas_src>

<mosaic_0001>
module attributes {stable_mosaic.version = 11 : i64} {
  func.func @_awl_kernel(%arg0: i32, %arg1: memref<16x128xf32, #tpu.memory_space<vmem>>, %arg2: memref<16x128xf32, #tpu.memory_space<vmem>>, %arg3: memref<8x128xf32, #tpu.memory_space<vmem>>) attributes {dimension_semantics = [#tpu.dimension_semantics<parallel>], iteration_bounds = array<i64: 1>, scalar_prefetch = 0 : i64, scratch_operands = 0 : i64, tpu.core_type = #tpu.core_type<tc>, window_params = [{transform_indices = @transform_0, window_bounds = array<i64: 16, 128>}, {transform_indices = @transform_1, window_bounds = array<i64: 16, 128>}, {transform_indices = @transform_2, window_bounds = array<i64: 8, 128>}]} {
    %c0 = arith.constant 0 : index
    %c0_0 = arith.constant 0 : index
    %0 = vector.load %arg2[%c0, %c0_0] : memref<16x128xf32, #tpu.memory_space<vmem>>, vector<16x128xf32>
    %c0_1 = arith.constant 0 : index
    %c0_2 = arith.constant 0 : index
    %1 = vector.load %arg1[%c0_1, %c0_2] : memref<16x128xf32, #tpu.memory_space<vmem>>, vector<16x128xf32>
    %2 = arith.subf %0, %1 : vector<16x128xf32>
    %3 = math.absf %2 : vector<16x128xf32>
    %cst = arith.constant 2.100000e+00 : f32
    %4 = vector.broadcast %cst : f32 to vector<16x128xf32>
    %5 = arith.subf %4, %0 : vector<16x128xf32>
    %cst_3 = arith.constant 0.0714285746 : f32
    %6 = vector.broadcast %cst_3 : f32 to vector<16x128xf32>
    %7 = arith.mulf %3, %6 : vector<16x128xf32>
    %8 = math.powf %7, %5 : vector<16x128xf32>
    %9 = math.log1p %8 : vector<16x128xf32>
    %cst_4 = arith.constant 1.400000e+01 : f32
    %10 = vector.broadcast %cst_4 : f32 to vector<16x128xf32>
    %11 = arith.mulf %10, %9 : vector<16x128xf32>
    %cst_5 = arith.constant -0.693147182 : f32
    %12 = vector.broadcast %cst_5 : f32 to vector<16x128xf32>
    %13 = arith.mulf %5, %12 : vector<16x128xf32>
    %14 = math.exp %13 : vector<16x128xf32>
    %cst_6 = arith.constant 1.000000e+00 : f32
    %15 = vector.broadcast %cst_6 : f32 to vector<16x128xf32>
    %16 = arith.addf %15, %14 : vector<16x128xf32>
    %17 = tpu.reciprocal %16 {approx = true} : vector<16x128xf32> -> vector<16x128xf32>
    %cst_7 = arith.constant 2.800000e+01 : f32
    %18 = vector.broadcast %cst_7 : f32 to vector<16x128xf32>
    %19 = arith.mulf %18, %5 : vector<16x128xf32>
    %20 = arith.mulf %19, %14 : vector<16x128xf32>
    %21 = arith.mulf %20, %17 : vector<16x128xf32>
    %cst_8 = arith.constant 5.000000e-01 : f32
    %22 = vector.broadcast %cst_8 : f32 to vector<16x128xf32>
    %23 = arith.mulf %22, %21 : vector<16x128xf32>
    %24 = math.log1p %14 : vector<16x128xf32>
    %cst_9 = arith.constant 1.400000e+01 : f32
    %25 = vector.broadcast %cst_9 : f32 to vector<16x128xf32>
    %26 = arith.mulf %25, %24 : vector<16x128xf32>
    %27 = arith.subf %23, %26 : vector<16x128xf32>
    %28 = arith.mulf %21, %3 : vector<16x128xf32>
    %29 = arith.subf %28, %27 : vector<16x128xf32>
    %cst_10 = arith.constant 5.000000e-01 : f32
    %30 = vector.broadcast %cst_10 : f32 to vector<16x128xf32>
    %31 = arith.cmpf olt, %3, %30 : vector<16x128xf32>
    %32 = arith.select %31, %11, %29 : vector<16x128xi1>, vector<16x128xf32>
    %33 = vector.shape_cast %32 : vector<16x128xf32> to vector<2x8x128xf32>
    %cst_11 = arith.constant dense<0.000000e+00> : vector<8x128xf32>
    %34 = vector.multi_reduction <add>, %33, %cst_11 [0] : vector<2x8x128xf32> to vector<8x128xf32>
    %c0_12 = arith.constant 0 : index
    %c0_13 = arith.constant 0 : index
    %35 = vector.load %arg3[%c0_12, %c0_13] : memref<8x128xf32, #tpu.memory_space<vmem>>, vector<8x128xf32>
    tpu.vector_store %arg3[%c0_12, %c0_13], %34 {strides = array<i32>} : memref<8x128xf32, #tpu.memory_space<vmem>>, vector<8x128xf32>,
    return
  }
  func.func @transform_0(%arg0: i32) -> (i32, i32) {
    %c0_i32 = arith.constant 0 : i32
    %c0_i32_0 = arith.constant 0 : i32
    return %arg0, %c0_i32 : i32, i32
  }
  func.func @transform_1(%arg0: i32) -> (i32, i32) {
    %c0_i32 = arith.constant 0 : i32
    %c0_i32_0 = arith.constant 0 : i32
    return %arg0, %c0_i32 : i32, i32
  }
  func.func @transform_2(%arg0: i32) -> (i32, i32) {
    %c0_i32 = arith.constant 0 : i32
    %c0_i32_0 = arith.constant 0 : i32
    return %arg0, %c0_i32 : i32, i32
  }
}

</mosaic_0001>

<llo_original>
// kernel: tpu_custom_call.1
$region0: #{tpu_custom_call.1}
  #allocation0 [shape = 'u32[]', space=smem, size = 0x4, offset = 0x4, fixed_abs, tag = 'smem constant byte address 0x4 - core index']
  #allocation1 [shape = 'u32[144,128]{1,0:T(1,128)}', space=vmem, size = 0x12000, scoped, tag = 'internal scratch']
  %s0 = inlined_call_operand.hbm [shape: f32[16,128], index: 0, kind: input, shape index: {}]
  %s1 = inlined_call_operand.hbm [shape: f32[16,128], index: 1, kind: input, shape index: {}]
  %s2 = inlined_call_operand.hbm [shape: f32[8,128], index: 2, kind: output, shape index: {}]
  %s3 = sld [smem:[#allocation0]]
  $region26: #{tpu_custom_call.1} parent=0
    _
  %s5 = ssub.s32 1, %s3
  %s6 = scalar_select 0, %s5, %s3
  $region1: #{tpu_custom_call.1} parent=0
    #allocation2 [shape = 'u8[8192]{0}', space=vmem, size = 0x2000, scoped, tag = 'input window, operand 0, single buffered']
    #allocation3 [shape = 's32[1]{0}', space=sflag, size = 0x4, scoped, tag = 'scoped memory for tpu_custom_call.1']
    #allocation4 [shape = 's32[1]{0}', space=sflag, size = 0x4, scoped, tag = 'scoped memory for tpu_custom_call.1']
    #allocation5 [shape = 'u8[8192]{0}', space=vmem, size = 0x2000, scoped, tag = 'input window, operand 1, single buffered']
    #allocation6 [shape = 's32[1]{0}', space=sflag, size = 0x4, scoped, tag = 'scoped memory for tpu_custom_call.1']
    #allocation7 [shape = 'u8[4096]{0}', space=vmem, size = 0x1000, scoped, tag = 'output window, operand 0, single buffered']
    %7 = vsyncpa [#allocation3], 0
    %8 = vsyncpa [#allocation6], 0
    %9 = vsyncpa [#allocation4], 0
    // Predicated region
    $region2: #{tpu_custom_call.1} parent=1 // pred_check
      _
    $region3: #{tpu_custom_call.1} parent=1 // pred_check_branch
      %11 = sbr.rel (0) target = $region5
    $region4: #{tpu_custom_call.1} parent=1 // pred_region
      %s13 = ssub.s32 256, 256
      %14 = vsyncadd [#allocation3], %s13
      %s15 = sshll.u32 [#allocation2], 4
      %s16 = int_to_ptr.vmem [resolvable:$true] %s15
      %21 = dma.hbm_to_vmem [thread:$0]  %s0, 256, %s16, [#allocation3], 128, 128, 8
    $region5: #{tpu_custom_call.1} parent=1 // pred_fallthru
      _
    // Predicated region
    $region6: #{tpu_custom_call.1} parent=1 // pred_check
      _
    $region7: #{tpu_custom_call.1} parent=1 // pred_check_branch
      %23 = sbr.rel (0) target = $region9
    $region8: #{tpu_custom_call.1} parent=1 // pred_region
      %s25 = ssub.s32 256, 256
      %26 = vsyncadd [#allocation6], %s25
      %s27 = sshll.u32 [#allocation5], 4
      %s28 = int_to_ptr.vmem [resolvable:$true] %s27
      %33 = dma.hbm_to_vmem [thread:$0]  %s1, 256, %s28, [#allocation6], 128, 128, 8
    $region9: #{tpu_custom_call.1} parent=1 // pred_fallthru
      _
    // Predicated region
    $region10: #{tpu_custom_call.1} parent=1 // pred_check
      _
    $region11: #{tpu_custom_call.1} parent=1 // pred_check_branch
      %35 = sbr.rel (0) target = $region13
    $region12: #{tpu_custom_call.1} parent=1 // pred_region
      %36 = dma.done [#allocation3], 256
    $region13: #{tpu_custom_call.1} parent=1 // pred_fallthru
      _
    // Predicated region
    $region14: #{tpu_custom_call.1} parent=1 // pred_check
      _
    $region15: #{tpu_custom_call.1} parent=1 // pred_check_branch
      %38 = sbr.rel (0) target = $region17
    $region16: #{tpu_custom_call.1} parent=1 // pred_region
      %39 = dma.done [#allocation6], 256
    $region17: #{tpu_custom_call.1} parent=1 // pred_fallthru
      _
    %v40 = vld [vmem:[#allocation5] sm:$0xff]
    %v41 = vld [vmem:[#allocation5 + $0x8] sm:$0xff]
    %v42 = vld [vmem:[#allocation2] sm:$0xff]
    %v43 = vld [vmem:[#allocation2 + $0x8] sm:$0xff]
    %v44 = vsub.f32 %v40, %v42
    %v45 = vsub.f32 %v41, %v43
    %v46 = vand.u32 2147483647, %v44
    %v47 = vand.u32 2147483647, %v45
    %v48 = vsub.f32 2.1, %v40
    %v49 = vsub.f32 2.1, %v41
    %v50 = vmul.f32 %v46, 0.071428575
    %v51 = vmul.f32 %v47, 0.071428575
    %v52 = vpow.f32 %v50, %v48
    %v53 = vpow.f32 %v51, %v49
    %v54 = vadd.f32 %v52, 1.0
    %v55 = vlog2.pop %v54
    %v56 = vmul.f32 %v55, 0.6931472
    %v57 = vmul.f32 -0.5, %v52
    %v58 = vadd.f32 %v57, 1.0
    %v59 = vmul.f32 %v58, %v52
    %v60 = vand.u32 2147483647, %v52
    %vm61 = vcmp.lt.f32.partialorder %v60, 0.0004427343
    %v62 = vsel %vm61, %v59, %v56
    %v63 = vadd.f32 %v53, 1.0
    %v64 = vlog2.pop %v63
    %v65 = vmul.f32 %v64, 0.6931472
    %v66 = vmul.f32 -0.5, %v53
    %v67 = vadd.f32 %v66, 1.0
    %v68 = vmul.f32 %v67, %v53
    %v69 = vand.u32 2147483647, %v53
    %vm70 = vcmp.lt.f32.partialorder %v69, 0.0004427343
    %v71 = vsel %vm70, %v68, %v65
    %v72 = vmul.f32 %v62, 14.0
    %v73 = vmul.f32 %v71, 14.0
    %v74 = vmul.f32 %v48, -0.6931472
    %v75 = vmul.f32 %v49, -0.6931472
    %v76 = vmul.f32 %v74, 1.442695
    %v77 = vpow.pop %v76
    %v78 = vmul.f32 %v75, 1.442695
    %v79 = vpow.pop %v78
    %v80 = vadd.f32 %v77, 1.0
    %v81 = vadd.f32 %v79, 1.0
    %v82 = vrcp.pop %v80
    %v83 = vrcp.pop %v81
    %v84 = vmul.f32 %v48, 28.0
    %v85 = vmul.f32 %v49, 28.0
    %v86 = vmul.f32 %v84, %v77
    %v87 = vmul.f32 %v85, %v79
    %v88 = vmul.f32 %v86, %v82
    %v89 = vmul.f32 %v87, %v83
    %v90 = vmul.f32 %v88, 0.5
    %v91 = vmul.f32 %v89, 0.5
    %v92 = vadd.f32 %v77, 1.0
    %v93 = vlog2.pop %v92
    %v94 = vmul.f32 %v93, 0.6931472
    %v95 = vmul.f32 -0.5, %v77
    %v96 = vadd.f32 %v95, 1.0
    %v97 = vmul.f32 %v96, %v77
    %v98 = vand.u32 2147483647, %v77
    %vm99 = vcmp.lt.f32.partialorder %v98, 0.0004427343
    %v100 = vsel %vm99, %v97, %v94
    %v101 = vadd.f32 %v79, 1.0
    %v102 = vlog2.pop %v101
    %v103 = vmul.f32 %v102, 0.6931472
    %v104 = vmul.f32 -0.5, %v79
    %v105 = vadd.f32 %v104, 1.0
    %v106 = vmul.f32 %v105, %v79
    %v107 = vand.u32 2147483647, %v79
    %vm108 = vcmp.lt.f32.partialorder %v107, 0.0004427343
    %v109 = vsel %vm108, %v106, %v103
    %v110 = vmul.f32 %v100, 14.0
    %v111 = vmul.f32 %v109, 14.0
    %v112 = vsub.f32 %v90, %v110
    %v113 = vsub.f32 %v91, %v111
    %v114 = vmul.f32 %v88, %v46
    %v115 = vmul.f32 %v89, %v47
    %v116 = vsub.f32 %v114, %v112
    %v117 = vsub.f32 %v115, %v113
    %vm118 = vcmp.lt.f32.partialorder %v46, 0.5
    %vm119 = vcmp.lt.f32.partialorder %v47, 0.5
    %v120 = vsel %vm118, %v72, %v116
    %v121 = vsel %vm119, %v73, %v117
    %v122 = vadd.f32 %v120, %v121
    %123 = vst [vmem:[#allocation7] sm:$0xff] %v122
    // Predicated region
    $region18: #{tpu_custom_call.1} parent=1 // pred_check
      _
    $region19: #{tpu_custom_call.1} parent=1 // pred_check_branch
      %125 = sbr.rel (0) target = $region21
    $region20: #{tpu_custom_call.1} parent=1 // pred_region
      %s127 = ssub.s32 128, 128
      %128 = vsyncadd [#allocation4], %s127
      %s130 = sshll.u32 [#allocation7], 4
      %s131 = int_to_ptr.vmem [resolvable:$true] %s130
      %133 = dma.vmem_to_hbm [thread:$0]  %s131, 128, %s2, [#allocation4]
    $region21: #{tpu_custom_call.1} parent=1 // pred_fallthru
      _
    // Predicated region
    $region22: #{tpu_custom_call.1} parent=1 // pred_check
      _
    $region23: #{tpu_custom_call.1} parent=1 // pred_check_branch
      %135 = sbr.rel (0) target = $region25
    $region24: #{tpu_custom_call.1} parent=1 // pred_region
      %136 = dma.done [#allocation4], 128
    $region25: #{tpu_custom_call.1} parent=1 // pred_fallthru
      _
    %137 = vsyncpa [#allocation3], 1
    %138 = vsyncpa [#allocation6], 1
    %139 = vsyncpa [#allocation4], 1

</llo_original>
